<compile_context>
chip_gen: v6e
topology: v6e:2x2x1
jax: 0.10.0
libtpu: 0.0.40
codegen_flags: <defaults>
</compile_context>

<pallas_src>
import functools

import jax
import jax.numpy as jnp
from jax.experimental import pallas as pl
from jax.experimental.pallas import tpu as pltpu


_LANE = 128
_SUBLANE = 8


def _round_up(x, m):
    return ((x + m - 1) // m) * m


def _pad_dim(d):
    """Padded size of a feature dimension (lane aligned, MXU-friendly)."""
    if d <= _LANE:
        return _LANE
    p256 = _round_up(d, 256)        # matches the 256-wide MXU on v6e/v7x
    p128 = _round_up(d, _LANE)
    # Prefer a multiple of 256 unless it inflates the dim by too much.
    return p256 if p256 <= max(p128, int(1.25 * d)) else p128


def _pad2(a, rows, cols):
    r, c = a.shape
    if r == rows and c == cols:
        return a
    return jnp.pad(a, ((0, rows - r), (0, cols - c)))


def _pick_tile(padded_dim, candidates):
    """Largest candidate tile that evenly divides the padded dimension."""
    for c in candidates:
        if c <= padded_dim and padded_dim % c == 0:
            return c
    return padded_dim


def _row_tiling(M):
    """(padded rows, row tile). Multiples of 256 for large M (MXU fill)."""
    if M <= 512:
        Mp = _round_up(M, _SUBLANE)
        return Mp, Mp
    Mp = _round_up(M, 256)
    tm = 512 if Mp % 512 == 0 else 256
    return Mp, tm


@functools.lru_cache(maxsize=None)
def _vmem_limit_bytes():
    """Generation-aware VMEM budget: ~55% of physical (64 MiB fallback)."""
    cap = 64 * 1024 * 1024
    try:
        cap = int(pltpu.get_tpu_info().vmem_capacity_bytes)
    except Exception:
        pass
    return int(0.55 * cap)


def _fused_vmem_budget():
    return (3 * _vmem_limit_bytes()) // 4


# ----------------------------------------------------------------------------
# Per-layer tiled matmul: y = x @ W + b, grid over (M, N, K) with accumulator.
# ----------------------------------------------------------------------------
def _linear_tiled_kernel(x_ref, w_ref, b_ref, o_ref, acc_ref):
    @pl.when(pl.program_id(2) == 0)
    def _():
        acc_ref[...] = jnp.zeros_like(acc_ref)

    # Feed the MXU at the weight dtype (bf16 by default), accumulate in f32.
    acc_ref[...] += jnp.dot(x_ref[...].astype(w_ref.dtype), w_ref[...],
                            preferred_element_type=jnp.float32)

    @pl.when(pl.program_id(2) == pl.num_programs(2) - 1)
    def _():
        o_ref[...] = (acc_ref[...] + b_ref[...].astype(jnp.float32)
                      ).astype(o_ref.dtype)


def _linear_tiled_padded(xp, wp, bp, *, tm, out_dtype, tn_max=512, tk_max=1024):
    """y = xp @ wp + bp on pre-padded operands; returns the padded result.

    xp:(Mp,Kp), wp:(Kp,Np) (bf16 for MXU rate), bp:(1,Np) f32. The padded
    dims are chosen so that the tiles divide them exactly; zero padding along
    K is mathematically neutral and padded rows/cols are sliced off by the
    caller at the very end.
    """
    Mp, Kp = xp.shape
    Kw, Np = wp.shape
    assert Kp == Kw and bp.shape == (1, Np) and Mp % tm == 0

    tn = _pick_tile(Np, (tn_max, 256, _LANE))
    tk = _pick_tile(Kp, (tk_max, 512, 256, _LANE))
    grid = (Mp // tm, Np // tn, Kp // tk)

    bytes_accessed = (xp.size * xp.dtype.itemsize + wp.size * wp.dtype.itemsize
                      + bp.size * bp.dtype.itemsize
                      + Mp * Np * jnp.dtype(out_dtype).itemsize)
    cost = pl.CostEstimate(flops=2 * Mp * Kp * Np, transcendentals=0,
                           bytes_accessed=int(bytes_accessed))

    return pl.pallas_call(
        _linear_tiled_kernel,
        out_shape=jax.ShapeDtypeStruct((Mp, Np), out_dtype),
        grid_spec=pltpu.PrefetchScalarGridSpec(
            num_scalar_prefetch=0,
            grid=grid,
            in_specs=[
                pl.BlockSpec((tm, tk), lambda i, j, k: (i, k)),
                # TODO(synk): pipeline_mode=pl.Buffered(3) on the weight spec
                # if the weight-stream DMA is still exposed after bf16.
                pl.BlockSpec((tk, tn), lambda i, j, k: (k, j)),
                pl.BlockSpec((1, tn), lambda i, j, k: (0, j)),
            ],
            out_specs=pl.BlockSpec((tm, tn), lambda i, j, k: (i, j)),
            scratch_shapes=[pltpu.VMEM((tm, tn), jnp.float32)],
        ),
        compiler_params=pltpu.CompilerParams(
            dimension_semantics=("parallel", "parallel", "arbitrary"),
            vmem_limit_bytes=_vmem_limit_bytes(),
        ),
        cost_estimate=cost,
    )(xp, wp, bp)


# ----------------------------------------------------------------------------
# Fused stack: one pallas_call, weights VMEM-resident, grid over rows only.
# ----------------------------------------------------------------------------
def _ffn_fused_kernel(*refs):
    # refs = (x_ref, w0, b0, w1, b1, ..., o_ref)
    x_ref, *wb_refs, o_ref = refs
    h = x_ref[...]
    for li in range(len(wb_refs) // 2):
        w_ref = wb_refs[2 * li]
        b_ref = wb_refs[2 * li + 1]
        # bf16 into the MXU, f32 accumulation + f32 bias add.
        h = jnp.dot(h.astype(w_ref.dtype), w_ref[...],
                    preferred_element_type=jnp.float32)
        h = h + b_ref[...].astype(jnp.float32)
    o_ref[...] = h.astype(o_ref.dtype)


def _make_fused_call(x_shape, x_dtype, padded_params, dims_p, tm, out_dtype,
                     single_buffer_weights):
    Mp = x_shape[0]
    in_specs = [pl.BlockSpec((tm, dims_p[0]), lambda i: (i, 0))]
    extra = {}
    if single_buffer_weights:
        # Grid-invariant weights/biases: one VMEM buffer instead of two.
        extra = dict(pipeline_mode=pl.Buffered(1))

    flops = 0
    bytes_accessed = (Mp * dims_p[0] * jnp.dtype(x_dtype).itemsize
                      + Mp * dims_p[-1] * jnp.dtype(out_dtype).itemsize)
    for li, (wp, bp) in enumerate(padded_params):
        kp, np_ = dims_p[li], dims_p[li + 1]
        in_specs.append(pl.BlockSpec((kp, np_), lambda i: (0, 0), **extra))
        in_specs.append(pl.BlockSpec((1, np_), lambda i: (0, 0), **extra))
        flops += 2 * Mp * kp * np_
        bytes_accessed += wp.size * wp.dtype.itemsize + bp.size * bp.dtype.itemsize

    return pl.pallas_call(
        _ffn_fused_kernel,
        out_shape=jax.ShapeDtypeStruct((Mp, dims_p[-1]), out_dtype),
        grid_spec=pltpu.PrefetchScalarGridSpec(
            num_scalar_prefetch=0,
            grid=(Mp // tm,),
            in_specs=in_specs,
            out_specs=pl.BlockSpec((tm, dims_p[-1]), lambda i: (i, 0)),
        ),
        compiler_params=pltpu.CompilerParams(
            dimension_semantics=("parallel",),
            vmem_limit_bytes=_vmem_limit_bytes(),
        ),
        cost_estimate=pl.CostEstimate(
            flops=flops, transcendentals=0, bytes_accessed=int(bytes_accessed)),
    )


def pallas_ffn_fused(xp, padded_params, dims_p, *, tm, out_dtype):
    """Whole Linear stack in one pallas_call; intermediates stay on-chip."""
    operands = [xp]
    for wp, bp in padded_params:
        operands.extend((wp, bp))
    try:
        call = _make_fused_call(xp.shape, xp.dtype, padded_params, dims_p, tm,
                                out_dtype, single_buffer_weights=True)
        return call(*operands)
    except Exception:
        # pl.Buffered(1) not supported by this jax/backend combo: fall back to
        # default double-buffering (costs VMEM headroom, not correctness).
        call = _make_fused_call(xp.shape, xp.dtype, padded_params, dims_p, tm,
                                out_dtype, single_buffer_weights=False)
        return call(*operands)


def _fused_vmem_bytes(dims_p, tm, param_dtype, x_dtype, out_dtype,
                      single_buffer_weights=True):
    """Estimated VMEM footprint of the fused path."""
    wbytes = jnp.dtype(param_dtype).itemsize
    wbuf = 1 if single_buffer_weights else 2
    w = sum(dims_p[i] * dims_p[i + 1] for i in range(len(dims_p) - 1)) * wbytes
    b = sum(dims_p[1:]) * 4
    io = (2 * tm * dims_p[0] * jnp.dtype(x_dtype).itemsize
          + 2 * tm * dims_p[-1] * jnp.dtype(out_dtype).itemsize)
    # Only ~2 intermediate activations are live at any point, not one/layer.
    act = 2 * tm * max(dims_p) * 4
    return wbuf * (w + b) + io + act


# ----------------------------------------------------------------------------
# Module wrapper
# ----------------------------------------------------------------------------
class FeedForwardBlockPallas:
    """Pallas re-implementation of farm's FeedForwardBlock (stack of Linear)."""

    def __init__(self, layer_dims, key, *, param_dtype=jnp.bfloat16):
        self.layer_dims = list(layer_dims)
        self.output_size = layer_dims[-1]
        self.param_dtype = jnp.dtype(param_dtype)
        self.dims_p = [_pad_dim(d) for d in self.layer_dims]

        self.params = []          # unpadded f32 (reference / export)
        self.padded_params = []   # pre-padded: weights in param_dtype, bias f32
        n_layers = len(layer_dims) - 1
        keys = jax.random.split(key, n_layers)
        for i in range(n_layers):
            size_in = layer_dims[i]
            size_out = layer_dims[i + 1]
            kw, kb = jax.random.split(keys[i])
            # nn.Linear default init: U(-1/sqrt(fan_in), 1/sqrt(fan_in))
            bound = 1.0 / (size_in ** 0.5)
            # weights stored pre-transposed: (in, out)
            w = jax.random.uniform(kw, (size_in, size_out), jnp.float32,
                                   -bound, bound)
            b = jax.random.uniform(kb, (size_out,), jnp.float32, -bound, bound)
            self.params.append((w, b))
            wp = _pad2(w.astype(self.param_dtype),
                       self.dims_p[i], self.dims_p[i + 1])
            bp = _pad2(b.reshape(1, -1), 1, self.dims_p[i + 1])
            self.padded_params.append((wp, bp))

    def __call__(self, x, *, force_path="auto"):
        orig_shape = x.shape
        assert orig_shape[-1] == self.layer_dims[0]
        h = x.reshape(-1, self.layer_dims[0])
        M = h.shape[0]
        out_dtype = x.dtype
        dims_p = self.dims_p

        # Fused row tile capped at 256: when M > 256 the grid has >=2 steps so
        # v7x's two TensorCores both get work via dimension_semantics=parallel.
        tm_fused = min(256, _round_up(M, _SUBLANE))
        fused_fits = (_fused_vmem_bytes(dims_p, tm_fused, self.param_dtype,
                                        x.dtype, out_dtype)
                      <= _fused_vmem_budget())
        use_fused = force_path == "fused" or (force_path == "auto" and fused_fits)

        if use_fused:
            Mp = _round_up(M, tm_fused)
            hp = _pad2(h, Mp, dims_p[0])
            outp = pallas_ffn_fused(hp, self.padded_params, dims_p,
                                    tm=tm_fused, out_dtype=out_dtype)
        else:
            # Tiled per-layer fallback: activations stay padded and are passed
            # between layers in bf16 (param dtype) — no slice/re-pad, half the
            # per-layer HBM round trip bytes.
            Mp, tm = _row_tiling(M)
            hp = _pad2(h, Mp, dims_p[0])
            n_layers = len(self.padded_params)
            for li, (wp, bp) in enumerate(self.padded_params):
                layer_dtype = out_dtype if li == n_layers - 1 else self.param_dtype
                hp = _linear_tiled_padded(hp, wp, bp, tm=tm,
                                          out_dtype=layer_dtype)
            outp = hp

        out = outp[:M, :self.output_size]
        return out.reshape(orig_shape[:-1] + (self.output_size,))


if __name__ == "__main__":
    key = jax.random.PRNGKey(0)
    k_param, k_x, k_param2, k_x2 = jax.random.split(key, 4)

    def reference(block, x):
        # f32 reference using the SAME quantised weights the kernel sees.
        h = x.reshape(-1, x.shape[-1])
        for w, b in block.params:
            wq = w.astype(block.param_dtype).astype(jnp.float32)
            h = jnp.dot(h, wq, precision=jax.lax.Precision.HIGHEST) + b
        return h.reshape(x.shape[:-1] + (block.output_size,))

    # --- Full block, fused path: layer_dims = [hidden, intermediate, out] ---
    layer_dims = [32, 64, 16]
    block = FeedForwardBlockPallas(layer_dims, k_param)
    x = jax.random.normal(k_x, (2, 8, 32), jnp.float32)   # (batch, seq, hidden)
    y = block(x)
    jax.block_until_ready(y)
    assert y.shape == (2, 8, 16)
    ref = reference(block, x)
    assert jnp.allclose(y, ref, atol=5e-2, rtol=5e-2), \
        float(jnp.max(jnp.abs(y - ref)))

    # --- Tiled per-layer path (forced), ragged dims exercise padding/chain ---
    layer_dims2 = [200, 320, 48]
    block2 = FeedForwardBlockPallas(layer_dims2, k_param2)
    x2 = jax.random.normal(k_x2, (4, 16, 200), jnp.float32)
    y2 = block2(x2, force_path="tiled")
    jax.block_until_ready(y2)
    assert y2.shape == (4, 16, 48)
    ref2 = reference(block2, x2)
    assert jnp.allclose(y2, ref2, atol=5e-2, rtol=5e-2), \
        float(jnp.max(jnp.abs(y2 - ref2)))

    # --- Both execution paths agree ---
    y2f = block2(x2, force_path="fused")
    jax.block_until_ready(y2f)
    assert jnp.allclose(y2, y2f, atol=5e-2, rtol=5e-2)

    print("KERNEL_OK")
</pallas_src>

<mosaic_0001>
module attributes {stable_mosaic.version = 11 : i64} {
  func.func @_ffn_fused_kernel(%arg0: i32, %arg1: memref<16x128xf32, #tpu.memory_space<vmem>>, %arg2: memref<128x128xbf16, #tpu.memory_space<vmem>>, %arg3: memref<1x128xf32, #tpu.memory_space<vmem>>, %arg4: memref<128x128xbf16, #tpu.memory_space<vmem>>, %arg5: memref<1x128xf32, #tpu.memory_space<vmem>>, %arg6: memref<16x128xf32, #tpu.memory_space<vmem>>) attributes {dimension_semantics = [#tpu.dimension_semantics<parallel>], iteration_bounds = array<i64: 1>, scalar_prefetch = 0 : i64, scratch_operands = 0 : i64, tpu.core_type = #tpu.core_type<tc>, window_params = [{transform_indices = @transform_0, window_bounds = array<i64: 16, 128>}, {pipeline_mode = #tpu.pipeline_mode<synchronous>, transform_indices = @transform_1, window_bounds = array<i64: 128, 128>}, {pipeline_mode = #tpu.pipeline_mode<synchronous>, transform_indices = @transform_2, window_bounds = array<i64: 1, 128>}, {pipeline_mode = #tpu.pipeline_mode<synchronous>, transform_indices = @transform_3, window_bounds = array<i64: 128, 128>}, {pipeline_mode = #tpu.pipeline_mode<synchronous>, transform_indices = @transform_4, window_bounds = array<i64: 1, 128>}, {transform_indices = @transform_5, window_bounds = array<i64: 16, 128>}]} {
    %c0 = arith.constant 0 : index
    %c0_0 = arith.constant 0 : index
    %0 = vector.load %arg1[%c0, %c0_0] : memref<16x128xf32, #tpu.memory_space<vmem>>, vector<16x128xf32>
    %1 = arith.truncf %0 : vector<16x128xf32> to vector<16x128xbf16>
    %c0_1 = arith.constant 0 : index
    %c0_2 = arith.constant 0 : index
    %2 = vector.load %arg2[%c0_1, %c0_2] : memref<128x128xbf16, #tpu.memory_space<vmem>>, vector<128x128xbf16>
    %cst = arith.constant dense<0.000000e+00> : vector<16x128xf32>
    %3 = tpu.matmul %1, %2, %cst {dimension_numbers = #tpu.dot_dimension_numbers<[1], [0], [0], [1], [0, 0, 1, 1], [], []>} : vector<16x128xbf16>, vector<128x128xbf16>, vector<16x128xf32> -> vector<16x128xf32>
    %c0_3 = arith.constant 0 : index
    %c0_4 = arith.constant 0 : index
    %4 = vector.load %arg3[%c0_3, %c0_4] : memref<1x128xf32, #tpu.memory_space<vmem>>, vector<1x128xf32>
    %5 = vector.broadcast %4 : vector<1x128xf32> to vector<16x128xf32>
    %6 = arith.addf %3, %5 : vector<16x128xf32>
    %7 = arith.truncf %6 : vector<16x128xf32> to vector<16x128xbf16>
    %c0_5 = arith.constant 0 : index
    %c0_6 = arith.constant 0 : index
    %8 = vector.load %arg4[%c0_5, %c0_6] : memref<128x128xbf16, #tpu.memory_space<vmem>>, vector<128x128xbf16>
    %cst_7 = arith.constant dense<0.000000e+00> : vector<16x128xf32>
    %9 = tpu.matmul %7, %8, %cst_7 {dimension_numbers = #tpu.dot_dimension_numbers<[1], [0], [0], [1], [0, 0, 1, 1], [], []>} : vector<16x128xbf16>, vector<128x128xbf16>, vector<16x128xf32> -> vector<16x128xf32>
    %c0_8 = arith.constant 0 : index
    %c0_9 = arith.constant 0 : index
    %10 = vector.load %arg5[%c0_8, %c0_9] : memref<1x128xf32, #tpu.memory_space<vmem>>, vector<1x128xf32>
    %11 = vector.broadcast %10 : vector<1x128xf32> to vector<16x128xf32>
    %12 = arith.addf %9, %11 : vector<16x128xf32>
    %c0_10 = arith.constant 0 : index
    %c0_11 = arith.constant 0 : index
    %13 = vector.load %arg6[%c0_10, %c0_11] : memref<16x128xf32, #tpu.memory_space<vmem>>, vector<16x128xf32>
    tpu.vector_store %arg6[%c0_10, %c0_11], %12 {strides = array<i32>} : memref<16x128xf32, #tpu.memory_space<vmem>>, vector<16x128xf32>,
    return
  }
  func.func @transform_0(%arg0: i32) -> (i32, i32) {
    %c0_i32 = arith.constant 0 : i32
    %c0_i32_0 = arith.constant 0 : i32
    return %arg0, %c0_i32 : i32, i32
  }
  func.func @transform_1(%arg0: i32) -> (i32, i32) {
    %c0_i32 = arith.constant 0 : i32
    %c0_i32_0 = arith.constant 0 : i32
    %c0_i32_1 = arith.constant 0 : i32
    return %c0_i32, %c0_i32_0 : i32, i32
  }
  func.func @transform_2(%arg0: i32) -> (i32, i32) {
    %c0_i32 = arith.constant 0 : i32
    %c0_i32_0 = arith.constant 0 : i32
    %c0_i32_1 = arith.constant 0 : i32
    return %c0_i32, %c0_i32_0 : i32, i32
  }
  func.func @transform_3(%arg0: i32) -> (i32, i32) {
    %c0_i32 = arith.constant 0 : i32
    %c0_i32_0 = arith.constant 0 : i32
    %c0_i32_1 = arith.constant 0 : i32
    return %c0_i32, %c0_i32_0 : i32, i32
  }
  func.func @transform_4(%arg0: i32) -> (i32, i32) {
    %c0_i32 = arith.constant 0 : i32
    %c0_i32_0 = arith.constant 0 : i32
    %c0_i32_1 = arith.constant 0 : i32
    return %c0_i32, %c0_i32_0 : i32, i32
  }
  func.func @transform_5(%arg0: i32) -> (i32, i32) {
    %c0_i32 = arith.constant 0 : i32
    %c0_i32_0 = arith.constant 0 : i32
    return %arg0, %c0_i32 : i32, i32
  }
}

module attributes {stable_mosaic.version = 11 : i64} {
  func.func @_ffn_fused_kernel(%arg0: i32, %arg1: memref<16x128xf32, #tpu.memory_space<vmem>>, %arg2: memref<128x128xbf16, #tpu.memory_space<vmem>>, %arg3: memref<1x128xf32, #tpu.memory_space<vmem>>, %arg4: memref<128x128xbf16, #tpu.memory_space<vmem>>, %arg5: memref<1x128xf32, #tpu.memory_space<vmem>>, %arg6: memref<16x128xf32, #tpu.memory_space<vmem>>) attributes {dimension_semantics = [#tpu.dimension_semantics<parallel>], iteration_bounds = array<i64: 1>, scalar_prefetch = 0 : i64, scratch_operands = 0 : i64, tpu.core_type = #tpu.core_type<tc>, window_params = [{transform_indices = @transform_0, window_bounds = array<i64: 16, 128>}, {pipeline_mode = #tpu.pipeline_mode<synchronous>, transform_indices = @transform_1, window_bounds = array<i64: 128, 128>}, {pipeline_mode = #tpu.pipeline_mode<synchronous>, transform_indices = @transform_2, window_bounds = array<i64: 1, 128>}, {pipeline_mode = #tpu.pipeline_mode<synchronous>, transform_indices = @transform_3, window_bounds = array<i64: 128, 128>}, {pipeline_mode = #tpu.pipeline_mode<synchronous>, transform_indices = @transform_4, window_bounds = array<i64: 1, 128>}, {transform_indices = @transform_5, window_bounds = array<i64: 16, 128>}]} {
    %c0 = arith.constant 0 : index
    %c0_0 = arith.constant 0 : index
    %0 = vector.load %arg1[%c0, %c0_0] : memref<16x128xf32, #tpu.memory_space<vmem>>, vector<16x128xf32>
    %1 = arith.truncf %0 : vector<16x128xf32> to vector<16x128xbf16>
    %c0_1 = arith.constant 0 : index
    %c0_2 = arith.constant 0 : index
    %2 = vector.load %arg2[%c0_1, %c0_2] : memref<128x128xbf16, #tpu.memory_space<vmem>>, vector<128x128xbf16>
    %cst = arith.constant dense<0.000000e+00> : vector<16x128xf32>
    %3 = tpu.matmul %1, %2, %cst {dimension_numbers = #tpu.dot_dimension_numbers<[1], [0], [0], [1], [0, 0, 1, 1], [], []>} : vector<16x128xbf16>, vector<128x128xbf16>, vector<16x128xf32> -> vector<16x128xf32>
    %c0_3 = arith.constant 0 : index
    %c0_4 = arith.constant 0 : index
    %4 = vector.load %arg3[%c0_3, %c0_4] : memref<1x128xf32, #tpu.memory_space<vmem>>, vector<1x128xf32>
    %5 = vector.broadcast %4 : vector<1x128xf32> to vector<16x128xf32>
    %6 = arith.addf %3, %5 : vector<16x128xf32>
    %7 = arith.truncf %6 : vector<16x128xf32> to vector<16x128xbf16>
    %c0_5 = arith.constant 0 : index
    %c0_6 = arith.constant 0 : index
    %8 = vector.load %arg4[%c0_5, %c0_6] : memref<128x128xbf16, #tpu.memory_space<vmem>>, vector<128x128xbf16>
    %cst_7 = arith.constant dense<0.000000e+00> : vector<16x128xf32>
    %9 = tpu.matmul %7, %8, %cst_7 {dimension_numbers = #tpu.dot_dimension_numbers<[1], [0], [0], [1], [0, 0, 1, 1], [], []>} : vector<16x128xbf16>, vector<128x128xbf16>, vector<16x128xf32> -> vector<16x128xf32>
    %c0_8 = arith.constant 0 : index
    %c0_9 = arith.constant 0 : index
    %10 = vector.load %arg5[%c0_8, %c0_9] : memref<1x128xf32, #tpu.memory_space<vmem>>, vector<1x128xf32>
    %11 = vector.broadcast %10 : vector<1x128xf32> to vector<16x128xf32>
    %12 = arith.addf %9, %11 : vector<16x128xf32>
    %c0_10 = arith.constant 0 : index
    %c0_11 = arith.constant 0 : index
    %13 = vector.load %arg6[%c0_10, %c0_11] : memref<16x128xf32, #tpu.memory_space<vmem>>, vector<16x128xf32>
    tpu.vector_store %arg6[%c0_10, %c0_11], %12 {strides = array<i32>} : memref<16x128xf32, #tpu.memory_space<vmem>>, vector<16x128xf32>,
    return
  }
  func.func @transform_0(%arg0: i32) -> (i32, i32) {
    %c0_i32 = arith.constant 0 : i32
    %c0_i32_0 = arith.constant 0 : i32
    return %arg0, %c0_i32 : i32, i32
  }
  func.func @transform_1(%arg0: i32) -> (i32, i32) {
    %c0_i32 = arith.constant 0 : i32
    %c0_i32_0 = arith.constant 0 : i32
    %c0_i32_1 = arith.constant 0 : i32
    return %c0_i32, %c0_i32_0 : i32, i32
  }
  func.func @transform_2(%arg0: i32) -> (i32, i32) {
    %c0_i32 = arith.constant 0 : i32
    %c0_i32_0 = arith.constant 0 : i32
    %c0_i32_1 = arith.constant 0 : i32
    return %c0_i32, %c0_i32_0 : i32, i32
  }
  func.func @transform_3(%arg0: i32) -> (i32, i32) {
    %c0_i32 = arith.constant 0 : i32
    %c0_i32_0 = arith.constant 0 : i32
    %c0_i32_1 = arith.constant 0 : i32
    return %c0_i32, %c0_i32_0 : i32, i32
  }
  func.func @transform_4(%arg0: i32) -> (i32, i32) {
    %c0_i32 = arith.constant 0 : i32
    %c0_i32_0 = arith.constant 0 : i32
    %c0_i32_1 = arith.constant 0 : i32
    return %c0_i32, %c0_i32_0 : i32, i32
  }
  func.func @transform_5(%arg0: i32) -> (i32, i32) {
    %c0_i32 = arith.constant 0 : i32
    %c0_i32_0 = arith.constant 0 : i32
    return %arg0, %c0_i32 : i32, i32
  }
}

</mosaic_0001>

<llo_original>
// kernel: tpu_custom_call.1
$region0: #{tpu_custom_call.1}
  #allocation0 [shape = 'u32[]', space=smem, size = 0x4, offset = 0x4, fixed_abs, tag = 'smem constant byte address 0x4 - core index']
  #allocation1 [shape = 'u32[144,128]{1,0:T(1,128)}', space=vmem, size = 0x12000, scoped, tag = 'internal scratch']
  %s0 = inlined_call_operand.hbm [shape: f32[16,128], index: 0, kind: input, shape index: {}]
  %s1 = inlined_call_operand.hbm [shape: bf16[128,128], index: 1, kind: input, shape index: {}]
  %s2 = inlined_call_operand.vmem [shape: f32[1,128], index: 2, kind: input, shape index: {}]
  %s3 = inlined_call_operand.hbm [shape: bf16[128,128], index: 3, kind: input, shape index: {}]
  %s4 = inlined_call_operand.vmem [shape: f32[1,128], index: 4, kind: input, shape index: {}]
  %s5 = inlined_call_operand.hbm [shape: f32[16,128], index: 5, kind: output, shape index: {}]
  %s6 = sld [smem:[#allocation0]]
  $region42: #{tpu_custom_call.1} parent=0
    _
  %s8 = ssub.s32 1, %s6
  %s9 = scalar_select 0, %s8, %s6
  $region1: #{tpu_custom_call.1} parent=0
    #allocation2 [shape = 'u8[8192]{0}', space=vmem, size = 0x2000, scoped, tag = 'input window, operand 0, single buffered']
    #allocation3 [shape = 's32[1]{0}', space=sflag, size = 0x4, scoped, tag = 'scoped memory for tpu_custom_call.1']
    #allocation4 [shape = 's32[1]{0}', space=sflag, size = 0x4, scoped, tag = 'scoped memory for tpu_custom_call.1']
    #allocation5 [shape = 'u8[32768]{0}', space=vmem, size = 0x8000, scoped, tag = 'input window, operand 1, single buffered']
    #allocation6 [shape = 's32[1]{0}', space=sflag, size = 0x4, scoped, tag = 'scoped memory for tpu_custom_call.1']
    #allocation7 [shape = 'u8[32768]{0}', space=vmem, size = 0x8000, scoped, tag = 'input window, operand 3, single buffered']
    #allocation8 [shape = 'u8[8192]{0}', space=vmem, size = 0x2000, scoped, tag = 'output window, operand 0, single buffered']
    %10 = vsyncpa [#allocation3], 0
    %11 = vsyncpa [#allocation6], 0
    %12 = vsyncpa [#allocation4], 0
    // Predicated region
    $region2: #{tpu_custom_call.1} parent=1 // pred_check
      _
    $region3: #{tpu_custom_call.1} parent=1 // pred_check_branch
      %14 = sbr.rel (0) target = $region5
    $region4: #{tpu_custom_call.1} parent=1 // pred_region
      %s16 = ssub.s32 256, 256
      %17 = vsyncadd [#allocation3], %s16
      %s18 = sshll.u32 [#allocation2], 4
      %s19 = int_to_ptr.vmem [resolvable:$true] %s18
      %24 = dma.hbm_to_vmem [thread:$0]  %s0, 256, %s19, [#allocation3], 128, 128, 8
    $region5: #{tpu_custom_call.1} parent=1 // pred_fallthru
      _
    // Predicated region
    $region6: #{tpu_custom_call.1} parent=1 // pred_check
      _
    $region7: #{tpu_custom_call.1} parent=1 // pred_check_branch
      %26 = sbr.rel (0) target = $region9
    $region8: #{tpu_custom_call.1} parent=1 // pred_region
      %s28 = ssub.s32 1024, 1024
      %29 = vsyncadd [#allocation6], %s28
      %s30 = sshll.u32 [#allocation5], 4
      %s31 = int_to_ptr.vmem [resolvable:$true] %s30
      %36 = dma.hbm_to_vmem [thread:$0]  %s1, 1024, %s31, [#allocation6], 64, 64, 4
    $region9: #{tpu_custom_call.1} parent=1 // pred_fallthru
      _
    // Predicated region
    $region10: #{tpu_custom_call.1} parent=1 // pred_check
      _
    $region11: #{tpu_custom_call.1} parent=1 // pred_check_branch
      %38 = sbr.rel (0) target = $region13
    $region12: #{tpu_custom_call.1} parent=1 // pred_region
      _
    $region13: #{tpu_custom_call.1} parent=1 // pred_fallthru
      _
    // Predicated region
    $region14: #{tpu_custom_call.1} parent=1 // pred_check
      _
    $region15: #{tpu_custom_call.1} parent=1 // pred_check_branch
      %40 = sbr.rel (0) target = $region17
    $region16: #{tpu_custom_call.1} parent=1 // pred_region
      %s42 = ssub.s32 1024, 1024
      %43 = vsyncadd [#allocation6], %s42
      %s44 = sshll.u32 [#allocation7], 4
      %s45 = int_to_ptr.vmem [resolvable:$true] %s44
      %50 = dma.hbm_to_vmem [thread:$0]  %s3, 1024, %s45, [#allocation6], 64, 64, 4
    $region17: #{tpu_custom_call.1} parent=1 // pred_fallthru
      _
    // Predicated region
    $region18: #{tpu_custom_call.1} parent=1 // pred_check
      _
    $region19: #{tpu_custom_call.1} parent=1 // pred_check_branch
      %52 = sbr.rel (0) target = $region21
    $region20: #{tpu_custom_call.1} parent=1 // pred_region
      _
    $region21: #{tpu_custom_call.1} parent=1 // pred_fallthru
      _
    // Predicated region
    $region22: #{tpu_custom_call.1} parent=1 // pred_check
      _
    $region23: #{tpu_custom_call.1} parent=1 // pred_check_branch
      %54 = sbr.rel (0) target = $region25
    $region24: #{tpu_custom_call.1} parent=1 // pred_region
      %55 = dma.done [#allocation3], 256
    $region25: #{tpu_custom_call.1} parent=1 // pred_fallthru
      _
    // Predicated region
    $region26: #{tpu_custom_call.1} parent=1 // pred_check
      _
    $region27: #{tpu_custom_call.1} parent=1 // pred_check_branch
      %57 = sbr.rel (0) target = $region29
    $region28: #{tpu_custom_call.1} parent=1 // pred_region
      %58 = dma.done [#allocation6], 1024
    $region29: #{tpu_custom_call.1} parent=1 // pred_fallthru
      _
    // Predicated region
    $region30: #{tpu_custom_call.1} parent=1 // pred_check
      _
    $region31: #{tpu_custom_call.1} parent=1 // pred_check_branch
      %60 = sbr.rel (0) target = $region33
    $region32: #{tpu_custom_call.1} parent=1 // pred_region
      %61 = dma.done [#allocation6], 1024
    $region33: #{tpu_custom_call.1} parent=1 // pred_fallthru
      _
    %v63 = vld [vmem:[#allocation2] sm:$0xff]
    %v64 = vld [vmem:[#allocation2 + $0x8] sm:$0xff]
    %v65 = vpack.c.bf16 %v64, %v63
    %v66 = vld [vmem:[#allocation5] sm:$0xf]
    %v67 = vld [vmem:[#allocation5 + $0x4] sm:$0xf]
    %v68 = vld [vmem:[#allocation5 + $0x8] sm:$0xf]
    %v69 = vld [vmem:[#allocation5 + $0xc] sm:$0xf]
    %v70 = vld [vmem:[#allocation5 + $0x10] sm:$0xf]
    %v71 = vld [vmem:[#allocation5 + $0x14] sm:$0xf]
    %v72 = vld [vmem:[#allocation5 + $0x18] sm:$0xf]
    %v73 = vld [vmem:[#allocation5 + $0x1c] sm:$0xf]
    %v74 = vld [vmem:[#allocation5 + $0x20] sm:$0xf]
    %v75 = vld [vmem:[#allocation5 + $0x24] sm:$0xf]
    %v76 = vld [vmem:[#allocation5 + $0x28] sm:$0xf]
    %v77 = vld [vmem:[#allocation5 + $0x2c] sm:$0xf]
    %v78 = vld [vmem:[#allocation5 + $0x30] sm:$0xf]
    %v79 = vld [vmem:[#allocation5 + $0x34] sm:$0xf]
    %v80 = vld [vmem:[#allocation5 + $0x38] sm:$0xf]
    %v81 = vld [vmem:[#allocation5 + $0x3c] sm:$0xf]
    %v82 = vld [vmem:[%s2] sm:$0x1]
    %v84 = vlaneseq
    %v85 = vshrl.u32 %v84, 7
    %v86 = vsub.s32 0, %v85
    %v87 = vrot.slane %v82, %v86
    %v105 = vunpack.c.l.b16 %v66
    %v106 = vunpack.c.l.b16 %v67
    %v107 = vunpack.c.l.b16 %v68
    %v108 = vunpack.c.l.b16 %v69
    %v109 = vunpack.c.l.b16 %v70
    %v110 = vunpack.c.l.b16 %v71
    %v111 = vunpack.c.l.b16 %v72
    %v112 = vunpack.c.l.b16 %v73
    %v113 = vunpack.c.l.b16 %v74
    %v114 = vunpack.c.l.b16 %v75
    %v115 = vunpack.c.l.b16 %v76
    %v116 = vunpack.c.l.b16 %v77
    %v117 = vunpack.c.l.b16 %v78
    %v118 = vunpack.c.l.b16 %v79
    %v119 = vunpack.c.l.b16 %v80
    %v120 = vunpack.c.l.b16 %v81
    %v121 = vpack.c.b16 %v106, %v105
    %v122 = vpack.c.b16 %v108, %v107
    %v123 = vpack.c.b16 %v110, %v109
    %v124 = vpack.c.b16 %v112, %v111
    %v125 = vpack.c.b16 %v114, %v113
    %v126 = vpack.c.b16 %v116, %v115
    %v127 = vpack.c.b16 %v118, %v117
    %v128 = vpack.c.b16 %v120, %v119
    %137 = vmatprep.subr.bf16.mxu0 0
    %138 = vmatpush1.bf16.msra.mxu0 %v128
    %139 = vmatprep.subr.bf16.mxu0 0
    %140 = vmatpush1.bf16.msra.mxu0 %v127
    %141 = vmatprep.subr.bf16.mxu0 0
    %142 = vmatpush1.bf16.msra.mxu0 %v126
    %143 = vmatprep.subr.bf16.mxu0 0
    %144 = vmatpush1.bf16.msra.mxu0 %v125
    %145 = vmatprep.subr.bf16.mxu0 0
    %146 = vmatpush1.bf16.msra.mxu0 %v124
    %147 = vmatprep.subr.bf16.mxu0 0
    %148 = vmatpush1.bf16.msra.mxu0 %v123
    %149 = vmatprep.subr.bf16.mxu0 0
    %150 = vmatpush1.bf16.msra.mxu0 %v122
    %151 = vmatprep.subr.bf16.mxu0 0
    %152 = vmatpush1.bf16.msra.mxu0 %v121
    %153 = vmatprep.subr.bf16.mxu0 0
    %154 = vmatpush2.bf16.msra.mxu0 0
    %155 = vmatprep.subr.bf16.mxu0 0
    %156 = vmatpush2.bf16.msra.mxu0 0
    %157 = vmatprep.subr.bf16.mxu0 0
    %158 = vmatpush2.bf16.msra.mxu0 0
    %159 = vmatprep.subr.bf16.mxu0 0
    %160 = vmatpush2.bf16.msra.mxu0 0
    %161 = vmatprep.subr.bf16.mxu0 0
    %162 = vmatpush2.bf16.msra.mxu0 0
    %163 = vmatprep.subr.bf16.mxu0 0
    %164 = vmatpush2.bf16.msra.mxu0 0
    %165 = vmatprep.subr.bf16.mxu0 0
    %166 = vmatpush2.bf16.msra.mxu0 0
    %167 = vmatprep.subr.bf16.mxu0 0
    %168 = vmatpush2.bf16.msra.mxu0 0
    %169 = vmatprep.mubr.bf16.mxu0 0
    %170 = vmatmul.mubr.bf16.gmra.mxu0 %v65
    %v171 = vpop.f32.mrf.mxu0
    %v172 = vadd.f32 %v87, %v171
    %v173 = vpop.f32.mrf.mxu0
    %v174 = vpop.f32.mrf.mxu0
    %v175 = vadd.f32 %v87, %v174
    %v176 = vpop.f32.mrf.mxu0
    %177 = vdwg.mxu0
    %v178 = vpack.c.bf16 %v175, %v172
    %v179 = vld [vmem:[#allocation7] sm:$0xf]
    %v180 = vld [vmem:[#allocation7 + $0x4] sm:$0xf]
    %v181 = vld [vmem:[#allocation7 + $0x8] sm:$0xf]
    %v182 = vld [vmem:[#allocation7 + $0xc] sm:$0xf]
    %v183 = vld [vmem:[#allocation7 + $0x10] sm:$0xf]
    %v184 = vld [vmem:[#allocation7 + $0x14] sm:$0xf]
    %v185 = vld [vmem:[#allocation7 + $0x18] sm:$0xf]
    %v186 = vld [vmem:[#allocation7 + $0x1c] sm:$0xf]
    %v187 = vld [vmem:[#allocation7 + $0x20] sm:$0xf]
    %v188 = vld [vmem:[#allocation7 + $0x24] sm:$0xf]
    %v189 = vld [vmem:[#allocation7 + $0x28] sm:$0xf]
    %v190 = vld [vmem:[#allocation7 + $0x2c] sm:$0xf]
    %v191 = vld [vmem:[#allocation7 + $0x30] sm:$0xf]
    %v192 = vld [vmem:[#allocation7 + $0x34] sm:$0xf]
    %v193 = vld [vmem:[#allocation7 + $0x38] sm:$0xf]
    %v194 = vld [vmem:[#allocation7 + $0x3c] sm:$0xf]
    %v195 = vld [vmem:[%s4] sm:$0x1]
    %v197 = vlaneseq
    %v198 = vshrl.u32 %v197, 7
    %v199 = vsub.s32 0, %v198
    %v200 = vrot.slane %v195, %v199
    %v218 = vunpack.c.l.b16 %v179
    %v219 = vunpack.c.l.b16 %v180
    %v220 = vunpack.c.l.b16 %v181
    %v221 = vunpack.c.l.b16 %v182
    %v222 = vunpack.c.l.b16 %v183
    %v223 = vunpack.c.l.b16 %v184
    %v224 = vunpack.c.l.b16 %v185
    %v225 = vunpack.c.l.b16 %v186
    %v226 = vunpack.c.l.b16 %v187
    %v227 = vunpack.c.l.b16 %v188
    %v228 = vunpack.c.l.b16 %v189
    %v229 = vunpack.c.l.b16 %v190
    %v230 = vunpack.c.l.b16 %v191
    %v231 = vunpack.c.l.b16 %v192
    %v232 = vunpack.c.l.b16 %v193
    %v233 = vunpack.c.l.b16 %v194
    %v234 = vpack.c.b16 %v219, %v218
    %v235 = vpack.c.b16 %v221, %v220
    %v236 = vpack.c.b16 %v223, %v222
    %v237 = vpack.c.b16 %v225, %v224
    %v238 = vpack.c.b16 %v227, %v226
    %v239 = vpack.c.b16 %v229, %v228
    %v240 = vpack.c.b16 %v231, %v230
    %v241 = vpack.c.b16 %v233, %v232
    %250 = vmatprep.subr.bf16.mxu0 0
    %251 = vmatpush1.bf16.msra.mxu0 %v241
    %252 = vmatprep.subr.bf16.mxu0 0
    %253 = vmatpush1.bf16.msra.mxu0 %v240
    %254 = vmatprep.subr.bf16.mxu0 0
    %255 = vmatpush1.bf16.msra.mxu0 %v239
    %256 = vmatprep.subr.bf16.mxu0 0
    %257 = vmatpush1.bf16.msra.mxu0 %v238
    %258 = vmatprep.subr.bf16.mxu0 0
    %259 = vmatpush1.bf16.msra.mxu0 %v237
    %260 = vmatprep.subr.bf16.mxu0 0
    %261 = vmatpush1.bf16.msra.mxu0 %v236
    %262 = vmatprep.subr.bf16.mxu0 0
    %263 = vmatpush1.bf16.msra.mxu0 %v235
    %264 = vmatprep.subr.bf16.mxu0 0
    %265 = vmatpush1.bf16.msra.mxu0 %v234
    %266 = vmatprep.subr.bf16.mxu0 0
    %267 = vmatpush2.bf16.msra.mxu0 0
    %268 = vmatprep.subr.bf16.mxu0 0
    %269 = vmatpush2.bf16.msra.mxu0 0
    %270 = vmatprep.subr.bf16.mxu0 0
    %271 = vmatpush2.bf16.msra.mxu0 0
    %272 = vmatprep.subr.bf16.mxu0 0
    %273 = vmatpush2.bf16.msra.mxu0 0
    %274 = vmatprep.subr.bf16.mxu0 0
    %275 = vmatpush2.bf16.msra.mxu0 0
    %276 = vmatprep.subr.bf16.mxu0 0
    %277 = vmatpush2.bf16.msra.mxu0 0
    %278 = vmatprep.subr.bf16.mxu0 0
    %279 = vmatpush2.bf16.msra.mxu0 0
    %280 = vmatprep.subr.bf16.mxu0 0
    %281 = vmatpush2.bf16.msra.mxu0 0
    %282 = vmatprep.mubr.bf16.mxu0 0
    %283 = vmatmul.mubr.bf16.gmra.mxu0 %v178
    %v284 = vpop.f32.mrf.mxu0
    %v285 = vadd.f32 %v200, %v284
    %v286 = vpop.f32.mrf.mxu0
    %v287 = vpop.f32.mrf.mxu0
    %v288 = vadd.f32 %v200, %v287
    %v289 = vpop.f32.mrf.mxu0
    %290 = vdwg.mxu0
    %291 = vst [vmem:[#allocation8] sm:$0xff] %v285
    %292 = vst [vmem:[#allocation8 + $0x8] sm:$0xff] %v288
    // Predicated region
    $region34: #{tpu_custom_call.1} parent=1 // pred_check
      _
    $region35: #{tpu_custom_call.1} parent=1 // pred_check_branch
      %294 = sbr.rel (0) target = $region37
    $region36: #{tpu_custom_call.1} parent=1 // pred_region
      %s296 = ssub.s32 256, 256
      %297 = vsyncadd [#allocation4], %s296
      %s298 = sshll.u32 [#allocation8], 4
      %s299 = int_to_ptr.vmem [resolvable:$true] %s298
      %304 = dma.vmem_to_hbm [thread:$0]  %s299, 256, %s5, [#allocation4], 128, 128, 8
    $region37: #{tpu_custom_call.1} parent=1 // pred_fallthru
      _
    // Predicated region
    $region38: #{tpu_custom_call.1} parent=1 // pred_check
      _
    $region39: #{tpu_custom_call.1} parent=1 // pred_check_branch
      %306 = sbr.rel (0) target = $region41
    $region40: #{tpu_custom_call.1} parent=1 // pred_region
      %307 = dma.done [#allocation4], 256
    $region41: #{tpu_custom_call.1} parent=1 // pred_fallthru
      _
    %308 = vsyncpa [#allocation3], 1
    %309 = vsyncpa [#allocation6], 1
    %310 = vsyncpa [#allocation4], 1

// kernel: tpu_custom_call.1
$region0: #{tpu_custom_call.1}
  #allocation0 [shape = 'u32[]', space=smem, size = 0x4, offset = 0x4, fixed_abs, tag = 'smem constant byte address 0x4 - core index']
  #allocation1 [shape = 'u32[144,128]{1,0:T(1,128)}', space=vmem, size = 0x12000, scoped, tag = 'internal scratch']
  %s0 = inlined_call_operand.hbm [shape: f32[16,128], index: 0, kind: input, shape index: {}]
  %s1 = inlined_call_operand.hbm [shape: bf16[128,128], index: 1, kind: input, shape index: {}]
  %s2 = inlined_call_operand.vmem [shape: f32[1,128], index: 2, kind: input, shape index: {}]
  %s3 = inlined_call_operand.hbm [shape: bf16[128,128], index: 3, kind: input, shape index: {}]
  %s4 = inlined_call_operand.vmem [shape: f32[1,128], index: 4, kind: input, shape index: {}]
  %s5 = inlined_call_operand.hbm [shape: f32[16,128], index: 5, kind: output, shape index: {}]
  %s6 = sld [smem:[#allocation0]]
  $region42: #{tpu_custom_call.1} parent=0
    _
  %s8 = ssub.s32 1, %s6
  %s9 = scalar_select 0, %s8, %s6
  $region1: #{tpu_custom_call.1} parent=0
    #allocation2 [shape = 'u8[8192]{0}', space=vmem, size = 0x2000, scoped, tag = 'input window, operand 0, single buffered']
    #allocation3 [shape = 's32[1]{0}', space=sflag, size = 0x4, scoped, tag = 'scoped memory for tpu_custom_call.1']
    #allocation4 [shape = 's32[1]{0}', space=sflag, size = 0x4, scoped, tag = 'scoped memory for tpu_custom_call.1']
    #allocation5 [shape = 'u8[32768]{0}', space=vmem, size = 0x8000, scoped, tag = 'input window, operand 1, single buffered']
    #allocation6 [shape = 's32[1]{0}', space=sflag, size = 0x4, scoped, tag = 'scoped memory for tpu_custom_call.1']
    #allocation7 [shape = 'u8[32768]{0}', space=vmem, size = 0x8000, scoped, tag = 'input window, operand 3, single buffered']
    #allocation8 [shape = 'u8[8192]{0}', space=vmem, size = 0x2000, scoped, tag = 'output window, operand 0, single buffered']
    %10 = vsyncpa [#allocation3], 0
    %11 = vsyncpa [#allocation6], 0
    %12 = vsyncpa [#allocation4], 0
    // Predicated region
    $region2: #{tpu_custom_call.1} parent=1 // pred_check
      _
    $region3: #{tpu_custom_call.1} parent=1 // pred_check_branch
      %14 = sbr.rel (0) target = $region5
    $region4: #{tpu_custom_call.1} parent=1 // pred_region
      %s16 = ssub.s32 256, 256
      %17 = vsyncadd [#allocation3], %s16
      %s18 = sshll.u32 [#allocation2], 4
      %s19 = int_to_ptr.vmem [resolvable:$true] %s18
      %24 = dma.hbm_to_vmem [thread:$0]  %s0, 256, %s19, [#allocation3], 128, 128, 8
    $region5: #{tpu_custom_call.1} parent=1 // pred_fallthru
      _
    // Predicated region
    $region6: #{tpu_custom_call.1} parent=1 // pred_check
      _
    $region7: #{tpu_custom_call.1} parent=1 // pred_check_branch
      %26 = sbr.rel (0) target = $region9
    $region8: #{tpu_custom_call.1} parent=1 // pred_region
      %s28 = ssub.s32 1024, 1024
      %29 = vsyncadd [#allocation6], %s28
      %s30 = sshll.u32 [#allocation5], 4
      %s31 = int_to_ptr.vmem [resolvable:$true] %s30
      %36 = dma.hbm_to_vmem [thread:$0]  %s1, 1024, %s31, [#allocation6], 64, 64, 4
    $region9: #{tpu_custom_call.1} parent=1 // pred_fallthru
      _
    // Predicated region
    $region10: #{tpu_custom_call.1} parent=1 // pred_check
      _
    $region11: #{tpu_custom_call.1} parent=1 // pred_check_branch
      %38 = sbr.rel (0) target = $region13
    $region12: #{tpu_custom_call.1} parent=1 // pred_region
      _
    $region13: #{tpu_custom_call.1} parent=1 // pred_fallthru
      _
    // Predicated region
    $region14: #{tpu_custom_call.1} parent=1 // pred_check
      _
    $region15: #{tpu_custom_call.1} parent=1 // pred_check_branch
      %40 = sbr.rel (0) target = $region17
    $region16: #{tpu_custom_call.1} parent=1 // pred_region
      %s42 = ssub.s32 1024, 1024
      %43 = vsyncadd [#allocation6], %s42
      %s44 = sshll.u32 [#allocation7], 4
      %s45 = int_to_ptr.vmem [resolvable:$true] %s44
      %50 = dma.hbm_to_vmem [thread:$0]  %s3, 1024, %s45, [#allocation6], 64, 64, 4
    $region17: #{tpu_custom_call.1} parent=1 // pred_fallthru
      _
    // Predicated region
    $region18: #{tpu_custom_call.1} parent=1 // pred_check
      _
    $region19: #{tpu_custom_call.1} parent=1 // pred_check_branch
      %52 = sbr.rel (0) target = $region21
    $region20: #{tpu_custom_call.1} parent=1 // pred_region
      _
    $region21: #{tpu_custom_call.1} parent=1 // pred_fallthru
      _
    // Predicated region
    $region22: #{tpu_custom_call.1} parent=1 // pred_check
      _
    $region23: #{tpu_custom_call.1} parent=1 // pred_check_branch
      %54 = sbr.rel (0) target = $region25
    $region24: #{tpu_custom_call.1} parent=1 // pred_region
      %55 = dma.done [#allocation3], 256
    $region25: #{tpu_custom_call.1} parent=1 // pred_fallthru
      _
    // Predicated region
    $region26: #{tpu_custom_call.1} parent=1 // pred_check
      _
    $region27: #{tpu_custom_call.1} parent=1 // pred_check_branch
      %57 = sbr.rel (0) target = $region29
    $region28: #{tpu_custom_call.1} parent=1 // pred_region
      %58 = dma.done [#allocation6], 1024
    $region29: #{tpu_custom_call.1} parent=1 // pred_fallthru
      _
    // Predicated region
    $region30: #{tpu_custom_call.1} parent=1 // pred_check
      _
    $region31: #{tpu_custom_call.1} parent=1 // pred_check_branch
      %60 = sbr.rel (0) target = $region33
    $region32: #{tpu_custom_call.1} parent=1 // pred_region
      %61 = dma.done [#allocation6], 1024
    $region33: #{tpu_custom_call.1} parent=1 // pred_fallthru
      _
    %v63 = vld [vmem:[#allocation2] sm:$0xff]
    %v64 = vld [vmem:[#allocation2 + $0x8] sm:$0xff]
    %v65 = vpack.c.bf16 %v64, %v63
    %v66 = vld [vmem:[#allocation5] sm:$0xf]
    %v67 = vld [vmem:[#allocation5 + $0x4] sm:$0xf]
    %v68 = vld [vmem:[#allocation5 + $0x8] sm:$0xf]
    %v69 = vld [vmem:[#allocation5 + $0xc] sm:$0xf]
    %v70 = vld [vmem:[#allocation5 + $0x10] sm:$0xf]
    %v71 = vld [vmem:[#allocation5 + $0x14] sm:$0xf]
    %v72 = vld [vmem:[#allocation5 + $0x18] sm:$0xf]
    %v73 = vld [vmem:[#allocation5 + $0x1c] sm:$0xf]
    %v74 = vld [vmem:[#allocation5 + $0x20] sm:$0xf]
    %v75 = vld [vmem:[#allocation5 + $0x24] sm:$0xf]
    %v76 = vld [vmem:[#allocation5 + $0x28] sm:$0xf]
    %v77 = vld [vmem:[#allocation5 + $0x2c] sm:$0xf]
    %v78 = vld [vmem:[#allocation5 + $0x30] sm:$0xf]
    %v79 = vld [vmem:[#allocation5 + $0x34] sm:$0xf]
    %v80 = vld [vmem:[#allocation5 + $0x38] sm:$0xf]
    %v81 = vld [vmem:[#allocation5 + $0x3c] sm:$0xf]
    %v82 = vld [vmem:[%s2] sm:$0x1]
    %v84 = vlaneseq
    %v85 = vshrl.u32 %v84, 7
    %v86 = vsub.s32 0, %v85
    %v87 = vrot.slane %v82, %v86
    %v105 = vunpack.c.l.b16 %v66
    %v106 = vunpack.c.l.b16 %v67
    %v107 = vunpack.c.l.b16 %v68
    %v108 = vunpack.c.l.b16 %v69
    %v109 = vunpack.c.l.b16 %v70
    %v110 = vunpack.c.l.b16 %v71
    %v111 = vunpack.c.l.b16 %v72
    %v112 = vunpack.c.l.b16 %v73
    %v113 = vunpack.c.l.b16 %v74
    %v114 = vunpack.c.l.b16 %v75
    %v115 = vunpack.c.l.b16 %v76
    %v116 = vunpack.c.l.b16 %v77
    %v117 = vunpack.c.l.b16 %v78
    %v118 = vunpack.c.l.b16 %v79
    %v119 = vunpack.c.l.b16 %v80
    %v120 = vunpack.c.l.b16 %v81
    %v121 = vpack.c.b16 %v106, %v105
    %v122 = vpack.c.b16 %v108, %v107
    %v123 = vpack.c.b16 %v110, %v109
    %v124 = vpack.c.b16 %v112, %v111
    %v125 = vpack.c.b16 %v114, %v113
    %v126 = vpack.c.b16 %v116, %v115
    %v127 = vpack.c.b16 %v118, %v117
    %v128 = vpack.c.b16 %v120, %v119
    %137 = vmatprep.subr.bf16.mxu0 0
    %138 = vmatpush1.bf16.msra.mxu0 %v128
    %139 = vmatprep.subr.bf16.mxu0 0
    %140 = vmatpush1.bf16.msra.mxu0 %v127
    %141 = vmatprep.subr.bf16.mxu0 0
    %142 = vmatpush1.bf16.msra.mxu0 %v126
    %143 = vmatprep.subr.bf16.mxu0 0
    %144 = vmatpush1.bf16.msra.mxu0 %v125
    %145 = vmatprep.subr.bf16.mxu0 0
    %146 = vmatpush1.bf16.msra.mxu0 %v124
    %147 = vmatprep.subr.bf16.mxu0 0
    %148 = vmatpush1.bf16.msra.mxu0 %v123
    %149 = vmatprep.subr.bf16.mxu0 0
    %150 = vmatpush1.bf16.msra.mxu0 %v122
    %151 = vmatprep.subr.bf16.mxu0 0
    %152 = vmatpush1.bf16.msra.mxu0 %v121
    %153 = vmatprep.subr.bf16.mxu0 0
    %154 = vmatpush2.bf16.msra.mxu0 0
    %155 = vmatprep.subr.bf16.mxu0 0
    %156 = vmatpush2.bf16.msra.mxu0 0
    %157 = vmatprep.subr.bf16.mxu0 0
    %158 = vmatpush2.bf16.msra.mxu0 0
    %159 = vmatprep.subr.bf16.mxu0 0
    %160 = vmatpush2.bf16.msra.mxu0 0
    %161 = vmatprep.subr.bf16.mxu0 0
    %162 = vmatpush2.bf16.msra.mxu0 0
    %163 = vmatprep.subr.bf16.mxu0 0
    %164 = vmatpush2.bf16.msra.mxu0 0
    %165 = vmatprep.subr.bf16.mxu0 0
    %166 = vmatpush2.bf16.msra.mxu0 0
    %167 = vmatprep.subr.bf16.mxu0 0
    %168 = vmatpush2.bf16.msra.mxu0 0
    %169 = vmatprep.mubr.bf16.mxu0 0
    %170 = vmatmul.mubr.bf16.gmra.mxu0 %v65
    %v171 = vpop.f32.mrf.mxu0
    %v172 = vadd.f32 %v87, %v171
    %v173 = vpop.f32.mrf.mxu0
    %v174 = vpop.f32.mrf.mxu0
    %v175 = vadd.f32 %v87, %v174
    %v176 = vpop.f32.mrf.mxu0
    %177 = vdwg.mxu0
    %v178 = vpack.c.bf16 %v175, %v172
    %v179 = vld [vmem:[#allocation7] sm:$0xf]
    %v180 = vld [vmem:[#allocation7 + $0x4] sm:$0xf]
    %v181 = vld [vmem:[#allocation7 + $0x8] sm:$0xf]
    %v182 = vld [vmem:[#allocation7 + $0xc] sm:$0xf]
    %v183 = vld [vmem:[#allocation7 + $0x10] sm:$0xf]
    %v184 = vld [vmem:[#allocation7 + $0x14] sm:$0xf]
    %v185 = vld [vmem:[#allocation7 + $0x18] sm:$0xf]
    %v186 = vld [vmem:[#allocation7 + $0x1c] sm:$0xf]
    %v187 = vld [vmem:[#allocation7 + $0x20] sm:$0xf]
    %v188 = vld [vmem:[#allocation7 + $0x24] sm:$0xf]
    %v189 = vld [vmem:[#allocation7 + $0x28] sm:$0xf]
    %v190 = vld [vmem:[#allocation7 + $0x2c] sm:$0xf]
    %v191 = vld [vmem:[#allocation7 + $0x30] sm:$0xf]
    %v192 = vld [vmem:[#allocation7 + $0x34] sm:$0xf]
    %v193 = vld [vmem:[#allocation7 + $0x38] sm:$0xf]
    %v194 = vld [vmem:[#allocation7 + $0x3c] sm:$0xf]
    %v195 = vld [vmem:[%s4] sm:$0x1]
    %v197 = vlaneseq
    %v198 = vshrl.u32 %v197, 7
    %v199 = vsub.s32 0, %v198
    %v200 = vrot.slane %v195, %v199
    %v218 = vunpack.c.l.b16 %v179
    %v219 = vunpack.c.l.b16 %v180
    %v220 = vunpack.c.l.b16 %v181
    %v221 = vunpack.c.l.b16 %v182
    %v222 = vunpack.c.l.b16 %v183
    %v223 = vunpack.c.l.b16 %v184
    %v224 = vunpack.c.l.b16 %v185
    %v225 = vunpack.c.l.b16 %v186
    %v226 = vunpack.c.l.b16 %v187
    %v227 = vunpack.c.l.b16 %v188
    %v228 = vunpack.c.l.b16 %v189
    %v229 = vunpack.c.l.b16 %v190
    %v230 = vunpack.c.l.b16 %v191
    %v231 = vunpack.c.l.b16 %v192
    %v232 = vunpack.c.l.b16 %v193
    %v233 = vunpack.c.l.b16 %v194
    %v234 = vpack.c.b16 %v219, %v218
    %v235 = vpack.c.b16 %v221, %v220
    %v236 = vpack.c.b16 %v223, %v222
    %v237 = vpack.c.b16 %v225, %v224
    %v238 = vpack.c.b16 %v227, %v226
    %v239 = vpack.c.b16 %v229, %v228
    %v240 = vpack.c.b16 %v231, %v230
    %v241 = vpack.c.b16 %v233, %v232
    %250 = vmatprep.subr.bf16.mxu0 0
    %251 = vmatpush1.bf16.msra.mxu0 %v241
    %252 = vmatprep.subr.bf16.mxu0 0
    %253 = vmatpush1.bf16.msra.mxu0 %v240
    %254 = vmatprep.subr.bf16.mxu0 0
    %255 = vmatpush1.bf16.msra.mxu0 %v239
    %256 = vmatprep.subr.bf16.mxu0 0
    %257 = vmatpush1.bf16.msra.mxu0 %v238
    %258 = vmatprep.subr.bf16.mxu0 0
    %259 = vmatpush1.bf16.msra.mxu0 %v237
    %260 = vmatprep.subr.bf16.mxu0 0
    %261 = vmatpush1.bf16.msra.mxu0 %v236
    %262 = vmatprep.subr.bf16.mxu0 0
    %263 = vmatpush1.bf16.msra.mxu0 %v235
    %264 = vmatprep.subr.bf16.mxu0 0
    %265 = vmatpush1.bf16.msra.mxu0 %v234
    %266 = vmatprep.subr.bf16.mxu0 0
    %267 = vmatpush2.bf16.msra.mxu0 0
    %268 = vmatprep.subr.bf16.mxu0 0
    %269 = vmatpush2.bf16.msra.mxu0 0
    %270 = vmatprep.subr.bf16.mxu0 0
    %271 = vmatpush2.bf16.msra.mxu0 0
    %272 = vmatprep.subr.bf16.mxu0 0
    %273 = vmatpush2.bf16.msra.mxu0 0
    %274 = vmatprep.subr.bf16.mxu0 0
    %275 = vmatpush2.bf16.msra.mxu0 0
    %276 = vmatprep.subr.bf16.mxu0 0
    %277 = vmatpush2.bf16.msra.mxu0 0
    %278 = vmatprep.subr.bf16.mxu0 0
    %279 = vmatpush2.bf16.msra.mxu0 0
    %280 = vmatprep.subr.bf16.mxu0 0
    %281 = vmatpush2.bf16.msra.mxu0 0
    %282 = vmatprep.mubr.bf16.mxu0 0
    %283 = vmatmul.mubr.bf16.gmra.mxu0 %v178
    %v284 = vpop.f32.mrf.mxu0
    %v285 = vadd.f32 %v200, %v284
    %v286 = vpop.f32.mrf.mxu0
    %v287 = vpop.f32.mrf.mxu0
    %v288 = vadd.f32 %v200, %v287
    %v289 = vpop.f32.mrf.mxu0
    %290 = vdwg.mxu0
    %291 = vst [vmem:[#allocation8] sm:$0xff] %v285
    %292 = vst [vmem:[#allocation8 + $0x8] sm:$0xff] %v288
    // Predicated region
    $region34: #{tpu_custom_call.1} parent=1 // pred_check
      _
    $region35: #{tpu_custom_call.1} parent=1 // pred_check_branch
      %294 = sbr.rel (0) target = $region37
    $region36: #{tpu_custom_call.1} parent=1 // pred_region
      %s296 = ssub.s32 256, 256
      %297 = vsyncadd [#allocation4], %s296
      %s298 = sshll.u32 [#allocation8], 4
      %s299 = int_to_ptr.vmem [resolvable:$true] %s298
      %304 = dma.vmem_to_hbm [thread:$0]  %s299, 256, %s5, [#allocation4], 128, 128, 8
    $region37: #{tpu_custom_call.1} parent=1 // pred_fallthru
      _
    // Predicated region
    $region38: #{tpu_custom_call.1} parent=1 // pred_check
      _
    $region39: #{tpu_custom_call.1} parent=1 // pred_check_branch
      %306 = sbr.rel (0) target = $region41
    $region40: #{tpu_custom_call.1} parent=1 // pred_region
      %307 = dma.done [#allocation4], 256
    $region41: #{tpu_custom_call.1} parent=1 // pred_fallthru
      _
    %308 = vsyncpa [#allocation3], 1
    %309 = vsyncpa [#allocation6], 1
    %310 = vsyncpa [#allocation4], 1

</llo_original>
